<compile_context>
chip_gen: v5e
topology: v5e:2x2
jax: 0.10.0
libtpu: 0.0.40
codegen_flags: <defaults>
</compile_context>

<pallas_src>
import functools

import jax
import jax.numpy as jnp
from jax.experimental import pallas as pl
from jax.experimental.pallas import tpu as pltpu


def _round_up(v: int, m: int) -> int:
    return (v + m - 1) // m * m


def _divisor_tile(dim: int, cap: int, align: int) -> int:
    """Largest multiple of `align` <= cap that divides round_up(dim, align)."""
    padded = _round_up(dim, align)
    t = max(align, (min(cap, padded) // align) * align)
    while t > align:
        if padded % t == 0:
            return t
        t -= align
    return align


def _vmem_capacity_bytes() -> int:
    try:
        return int(pltpu.get_tpu_info().vmem_capacity_bytes)
    except Exception:
        return 64 * 1024 * 1024  # conservative fallback (v7x per-core VMEM)


def _m_pack(op_dtype) -> int:
    # Sublane packing: 8 rows per vreg group at 4B, 16 at 2B, 32 at 1B.
    return max(8, 32 // jnp.dtype(op_dtype).itemsize)


# --------------------------------------------------------------------------
# Kernels
# --------------------------------------------------------------------------
def _linear_relu_kernel(x_ref, w_ref, b_ref, o_ref, acc_ref):
    """One (tm, tn) output tile, accumulated over the K grid axis."""
    k = pl.program_id(2)

    @pl.when(k == 0)
    def _():
        acc_ref[...] = jnp.zeros_like(acc_ref)

    acc_ref[...] += jnp.dot(
        x_ref[...], w_ref[...], preferred_element_type=jnp.float32
    )

    @pl.when(k == pl.num_programs(2) - 1)
    def _():
        acc = acc_ref[...] + b_ref[...]          # (tm, tn) + (1, tn)
        o_ref[...] = jnp.maximum(acc, 0.0).astype(o_ref.dtype)


def _linear_relu_single_k_kernel(x_ref, w_ref, b_ref, o_ref):
    """Single K step: no accumulator round-trip, write the tile directly."""
    acc = jnp.dot(x_ref[...], w_ref[...], preferred_element_type=jnp.float32)
    acc = acc + b_ref[...]
    o_ref[...] = jnp.maximum(acc, 0.0).astype(o_ref.dtype)


# --------------------------------------------------------------------------
# Jitted forward (x padded/cast per call; weight/bias already prepared)
# --------------------------------------------------------------------------
@functools.partial(
    jax.jit,
    static_argnames=("d_out", "cap_kn", "vmem_limit", "m_pack", "split_n"),
)
def _linear_block_forward(x, w_t, b, *, d_out, cap_kn, vmem_limit, m_pack,
                          split_n):
    B, d_in = x.shape
    Kp, Np = w_t.shape                 # weight already padded to 128-multiples
    op_dtype = w_t.dtype
    out_dtype = x.dtype
    op_bytes = jnp.dtype(op_dtype).itemsize
    out_bytes = jnp.dtype(out_dtype).itemsize

    # ---- tile selection -------------------------------------------------
    # Collapse the M grid axis whenever the whole batch fits, so the weight
    # (the dominant HBM stream) is read exactly once per call.
    if B <= 1024:
        tm = _round_up(B, m_pack)
    else:
        tm = _divisor_tile(B, 1024, m_pack)
        if tm < 256:                   # awkward batch: accept some row padding
            tm = 512
    Mp = _round_up(B, tm)

    tk = _divisor_tile(Kp, cap_kn, 128)   # exact divisors of the padded dims
    tn = _divisor_tile(Np, cap_kn, 128)

    # Dual-TensorCore chips (v7x): keep >= 2 parallel grid iterations when the
    # M axis collapsed and N would otherwise be a single tile.
    if split_n and Mp // tm == 1 and Np // tn == 1 and Np >= 256:
        tn = _divisor_tile(Np, Np // 2, 128)

    # VMEM footprint guard (double-buffered inputs/outputs + f32 accumulator).
    def footprint(tm_, tk_, tn_):
        return (2 * tm_ * tk_ * op_bytes
                + 2 * tk_ * tn_ * op_bytes
                + 2 * tm_ * tn_ * out_bytes
                + tm_ * tn_ * 4
                + 2 * tn_ * 4)

    while footprint(tm, tk, tn) > vmem_limit and max(tk, tn) > 128:
        if tk >= tn:
            tk = _divisor_tile(Kp, tk - 128, 128)
        else:
            tn = _divisor_tile(Np, tn - 128, 128)

    grid_m, grid_n, grid_k = Mp // tm, Np // tn, Kp // tk

    # ---- pad + cast the activation only (small; weight already prepared) --
    xp = x
    if Mp != B or Kp != d_in:
        xp = jnp.pad(xp, ((0, Mp - B), (0, Kp - d_in)))
    xp = xp.astype(op_dtype)

    # ---- cost estimate (padded shapes, operand re-reads) ------------------
    cost = pl.CostEstimate(
        flops=2 * Mp * Kp * Np,
        transcendentals=0,
        bytes_accessed=(grid_n * Mp * Kp * op_bytes     # x read per N tile
                        + grid_m * Kp * Np * op_bytes   # w read per M tile
                        + Mp * Np * out_bytes           # output write
                        + grid_m * Np * 4),             # bias read per M tile
    )

    if grid_k == 1:
        kernel = _linear_relu_single_k_kernel
        scratch = []
    else:
        kernel = _linear_relu_kernel
        scratch = [pltpu.VMEM((tm, tn), jnp.float32)]

    out_padded = pl.pallas_call(
        kernel,
        out_shape=jax.ShapeDtypeStruct((Mp, Np), out_dtype),
        grid_spec=pltpu.PrefetchScalarGridSpec(
            num_scalar_prefetch=0,
            grid=(grid_m, grid_n, grid_k),
            in_specs=[
                pl.BlockSpec((tm, tk), lambda i, j, k: (i, k)),   # x tile
                pl.BlockSpec((tk, tn), lambda i, j, k: (k, j)),   # w tile
                pl.BlockSpec((1, tn), lambda i, j, k: (0, j)),    # bias (N-only)
            ],
            out_specs=pl.BlockSpec((tm, tn), lambda i, j, k: (i, j)),
            scratch_shapes=scratch,
        ),
        compiler_params=pltpu.CompilerParams(
            dimension_semantics=("parallel", "parallel", "arbitrary"),
            vmem_limit_bytes=vmem_limit,
        ),
        cost_estimate=cost,
    )(xp, w_t, b)

    return out_padded[:B, :d_out]


# --------------------------------------------------------------------------
# Module-equivalent wrapper: prepares weight/bias ONCE at construction.
# --------------------------------------------------------------------------
class LinearBlockPallas:
    """LinearBlock(norm='none', activation='relu') with prepared weights.

    weight: (D_out, D_in) as stored by nn.Linear; bias: (D_out,).
    operand_dtype: matmul operand dtype (default bf16 -- MXU fast path on
    v5e/v6e/v7x); accumulation / bias / ReLU stay in float32.
    """

    def __init__(self, weight, bias, operand_dtype=jnp.bfloat16):
        weight = jnp.asarray(weight)
        bias = jnp.asarray(bias, dtype=jnp.float32)
        d_out, d_in = weight.shape
        self.d_in, self.d_out = d_in, d_out
        self.op_dtype = jnp.dtype(operand_dtype)

        Kp = _round_up(d_in, 128)
        Np = _round_up(d_out, 128)

        # One-time weight prep: transpose to MXU layout, zero-pad, cast.
        w_t = weight.T
        if Kp != d_in or Np != d_out:
            w_t = jnp.pad(w_t, ((0, Kp - d_in), (0, Np - d_out)))
        self.w_t = jax.device_put(w_t.astype(self.op_dtype))

        b = bias if Np == d_out else jnp.pad(bias, (0, Np - d_out))
        self.b = jax.device_put(b.reshape(1, Np))

        # Per-generation tile / VMEM policy.
        vmem = _vmem_capacity_bytes()
        if vmem >= 100 * 1024 * 1024:          # v5e / v6e (128 MiB VMEM)
            self.cap_kn = 2048 if self.op_dtype.itemsize <= 2 else 1024
            self.vmem_limit = 80 * 1024 * 1024
            self.split_n = False               # single TensorCore per chip
        else:                                   # v7x-like (64 MiB per core)
            self.cap_kn = 1024
            self.vmem_limit = 44 * 1024 * 1024
            self.split_n = True                # keep both TensorCores busy
        self.m_pack = _m_pack(self.op_dtype)

    def __call__(self, x):
        lead = x.shape[:-1]
        x2 = x.reshape(-1, x.shape[-1])
        out = _linear_block_forward(
            x2, self.w_t, self.b,
            d_out=self.d_out, cap_kn=self.cap_kn,
            vmem_limit=self.vmem_limit, m_pack=self.m_pack,
            split_n=self.split_n)
        return out.reshape(*lead, self.d_out)


if __name__ == "__main__":
    # Deterministic parameter / input construction (synthetic, no checkpoint).
    B, D_in, D_out = 8, 32, 64
    key = jax.random.PRNGKey(0)
    k_x, k_w, k_b = jax.random.split(key, 3)

    x = jax.random.normal(k_x, (B, D_in), dtype=jnp.float32)
    # nn.Linear default init: U(-1/sqrt(fan_in), 1/sqrt(fan_in))
    bound = 1.0 / (D_in ** 0.5)
    weight = jax.random.uniform(k_w, (D_out, D_in), minval=-bound, maxval=bound,
                                dtype=jnp.float32)
    bias = jax.random.uniform(k_b, (D_out,), minval=-bound, maxval=bound,
                              dtype=jnp.float32)

    ref = jnp.maximum(x @ weight.T + bias, 0.0)

    # f32-operand instance (bit-faithful to the PyTorch reference).
    block_f32 = LinearBlockPallas(weight, bias, operand_dtype=jnp.float32)
    out_f32 = jax.block_until_ready(block_f32(x))
    assert out_f32.shape == (B, D_out)
    assert jnp.allclose(out_f32, ref, atol=1e-5, rtol=1e-5)

    # Default bf16-operand instance (MXU fast path; f32 accumulate/epilogue).
    block_bf16 = LinearBlockPallas(weight, bias)
    out_bf16 = jax.block_until_ready(block_bf16(x))
    assert out_bf16.shape == (B, D_out)
    assert jnp.allclose(out_bf16, ref, atol=2e-2, rtol=2e-2)

    print("KERNEL_OK")
</pallas_src>

<mosaic_0001>
module attributes {stable_mosaic.version = 11 : i64} {
  func.func @_linear_relu_single_k_kernel(%arg0: i32, %arg1: i32, %arg2: i32, %arg3: memref<8x128xf32, #tpu.memory_space<vmem>>, %arg4: memref<128x128xf32, #tpu.memory_space<vmem>>, %arg5: memref<1x128xf32, #tpu.memory_space<vmem>>, %arg6: memref<8x128xf32, #tpu.memory_space<vmem>>) attributes {dimension_semantics = [#tpu.dimension_semantics<parallel>, #tpu.dimension_semantics<parallel>, #tpu.dimension_semantics<arbitrary>], iteration_bounds = array<i64: 1, 1, 1>, scalar_prefetch = 0 : i64, scratch_operands = 0 : i64, tpu.core_type = #tpu.core_type<tc>, window_params = [{transform_indices = @transform_0, window_bounds = array<i64: 8, 128>}, {transform_indices = @transform_1, window_bounds = array<i64: 128, 128>}, {transform_indices = @transform_2, window_bounds = array<i64: 1, 128>}, {transform_indices = @transform_3, window_bounds = array<i64: 8, 128>}]} {
    %c0 = arith.constant 0 : index
    %c0_0 = arith.constant 0 : index
    %0 = vector.load %arg3[%c0, %c0_0] : memref<8x128xf32, #tpu.memory_space<vmem>>, vector<8x128xf32>
    %c0_1 = arith.constant 0 : index
    %c0_2 = arith.constant 0 : index
    %1 = vector.load %arg4[%c0_1, %c0_2] : memref<128x128xf32, #tpu.memory_space<vmem>>, vector<128x128xf32>
    %cst = arith.constant dense<0.000000e+00> : vector<8x128xf32>
    %2 = tpu.matmul %0, %1, %cst {dimension_numbers = #tpu.dot_dimension_numbers<[1], [0], [0], [1], [0, 0, 1, 1], [], []>} : vector<8x128xf32>, vector<128x128xf32>, vector<8x128xf32> -> vector<8x128xf32>
    %c0_3 = arith.constant 0 : index
    %c0_4 = arith.constant 0 : index
    %3 = vector.load %arg5[%c0_3, %c0_4] : memref<1x128xf32, #tpu.memory_space<vmem>>, vector<1x128xf32>
    %4 = vector.broadcast %3 : vector<1x128xf32> to vector<8x128xf32>
    %5 = arith.addf %2, %4 : vector<8x128xf32>
    %cst_5 = arith.constant 0.000000e+00 : f32
    %6 = vector.broadcast %cst_5 : f32 to vector<8x128xf32>
    %7 = arith.maximumf %5, %6 : vector<8x128xf32>
    %c0_6 = arith.constant 0 : index
    %c0_7 = arith.constant 0 : index
    %8 = vector.load %arg6[%c0_6, %c0_7] : memref<8x128xf32, #tpu.memory_space<vmem>>, vector<8x128xf32>
    tpu.vector_store %arg6[%c0_6, %c0_7], %7 {strides = array<i32>} : memref<8x128xf32, #tpu.memory_space<vmem>>, vector<8x128xf32>,
    return
  }
  func.func @transform_0(%arg0: i32, %arg1: i32, %arg2: i32) -> (i32, i32) {
    %c0_i32 = arith.constant 0 : i32
    return %arg0, %arg2 : i32, i32
  }
  func.func @transform_1(%arg0: i32, %arg1: i32, %arg2: i32) -> (i32, i32) {
    %c0_i32 = arith.constant 0 : i32
    return %arg2, %arg1 : i32, i32
  }
  func.func @transform_2(%arg0: i32, %arg1: i32, %arg2: i32) -> (i32, i32) {
    %c0_i32 = arith.constant 0 : i32
    %c0_i32_0 = arith.constant 0 : i32
    return %c0_i32, %arg1 : i32, i32
  }
  func.func @transform_3(%arg0: i32, %arg1: i32, %arg2: i32) -> (i32, i32) {
    %c0_i32 = arith.constant 0 : i32
    return %arg0, %arg1 : i32, i32
  }
}

</mosaic_0001>

<llo_original>
// kernel: _linear_block_forward.1
$region0: #{_linear_block_forward.1}
  #allocation0 [shape = 'u32[]', space=smem, size = 0x4, offset = 0x4, fixed_abs, tag = 'smem constant byte address 0x4 - core index']
  #allocation1 [shape = 'u32[72,128]{1,0:T(1,128)}', space=vmem, size = 0x9000, scoped, tag = 'internal scratch']
  %s0 = inlined_call_operand.vmem [shape: f32[8,128], index: 0, kind: input, shape index: {}]
  %s1 = inlined_call_operand.hbm [shape: f32[128,128], index: 1, kind: input, shape index: {}]
  %s2 = inlined_call_operand.vmem [shape: f32[1,128], index: 2, kind: input, shape index: {}]
  %s3 = inlined_call_operand.hbm [shape: f32[8,128], index: 3, kind: output, shape index: {}]
  %s4 = sld [smem:[#allocation0]]
  $region26: #{_linear_block_forward.1} parent=0
    _
  %s6 = ssub.s32 1, %s4
  %s7 = scalar_select 0, %s6, %s4
  $region1: #{_linear_block_forward.1} parent=0
    #allocation2 [shape = 'u8[65536]{0}', space=vmem, size = 0x10000, scoped, tag = 'input window, operand 1, single buffered']
    #allocation3 [shape = 's32[1]{0}', space=sflag, size = 0x4, scoped, tag = 'scoped memory for _linear_block_forward.1']
    #allocation4 [shape = 's32[1]{0}', space=sflag, size = 0x4, scoped, tag = 'scoped memory for _linear_block_forward.1']
    #allocation5 [shape = 'u8[4096]{0}', space=vmem, size = 0x1000, scoped, tag = 'output window, operand 0, single buffered']
    %8 = vsyncpa [#allocation3], 0
    %9 = vsyncpa [#allocation4], 0
    // Predicated region
    $region2: #{_linear_block_forward.1} parent=1 // pred_check
      _
    $region3: #{_linear_block_forward.1} parent=1 // pred_check_branch
      %11 = sbr.rel (0) target = $region5
    $region4: #{_linear_block_forward.1} parent=1 // pred_region
      _
    $region5: #{_linear_block_forward.1} parent=1 // pred_fallthru
      _
    // Predicated region
    $region6: #{_linear_block_forward.1} parent=1 // pred_check
      _
    $region7: #{_linear_block_forward.1} parent=1 // pred_check_branch
      %13 = sbr.rel (0) target = $region9
    $region8: #{_linear_block_forward.1} parent=1 // pred_region
      %15 = vsyncadd [#allocation3], 0
      %s16 = sshll.u32 %s1, 4
      %s17 = int_to_ptr.hbm [resolvable:$true] %s16
      %s18 = sshll.u32 [#allocation2], 4
      %s19 = int_to_ptr.vmem [resolvable:$true] %s18
      %24 = dma.hbm_to_vmem [thread:$0]  %s17, 2048, %s19, [#allocation3], 128, 128, 8
    $region9: #{_linear_block_forward.1} parent=1 // pred_fallthru
      _
    // Predicated region
    $region10: #{_linear_block_forward.1} parent=1 // pred_check
      _
    $region11: #{_linear_block_forward.1} parent=1 // pred_check_branch
      %26 = sbr.rel (0) target = $region13
    $region12: #{_linear_block_forward.1} parent=1 // pred_region
      _
    $region13: #{_linear_block_forward.1} parent=1 // pred_fallthru
      _
    // Predicated region
    $region14: #{_linear_block_forward.1} parent=1 // pred_check
      _
    $region15: #{_linear_block_forward.1} parent=1 // pred_check_branch
      %28 = sbr.rel (0) target = $region17
    $region16: #{_linear_block_forward.1} parent=1 // pred_region
      %30 = dma.done [#allocation3], 2048
    $region17: #{_linear_block_forward.1} parent=1 // pred_fallthru
      _
    %v31 = vld [vmem:[%s0] sm:$0xff]
    %v32 = vld [vmem:[#allocation2] sm:$0xff]
    %v33 = vld [vmem:[#allocation2 + $0x8] sm:$0xff]
    %v34 = vld [vmem:[#allocation2 + $0x10] sm:$0xff]
    %v35 = vld [vmem:[#allocation2 + $0x18] sm:$0xff]
    %v36 = vld [vmem:[#allocation2 + $0x20] sm:$0xff]
    %v37 = vld [vmem:[#allocation2 + $0x28] sm:$0xff]
    %v38 = vld [vmem:[#allocation2 + $0x30] sm:$0xff]
    %v39 = vld [vmem:[#allocation2 + $0x38] sm:$0xff]
    %v40 = vld [vmem:[#allocation2 + $0x40] sm:$0xff]
    %v41 = vld [vmem:[#allocation2 + $0x48] sm:$0xff]
    %v42 = vld [vmem:[#allocation2 + $0x50] sm:$0xff]
    %v43 = vld [vmem:[#allocation2 + $0x58] sm:$0xff]
    %v44 = vld [vmem:[#allocation2 + $0x60] sm:$0xff]
    %v45 = vld [vmem:[#allocation2 + $0x68] sm:$0xff]
    %v46 = vld [vmem:[#allocation2 + $0x70] sm:$0xff]
    %v47 = vld [vmem:[#allocation2 + $0x78] sm:$0xff]
    %v48 = vld [vmem:[%s2] sm:$0x1]
    %v50 = vperm.slane %v48, 0
    %52 = vmatpush.msra.mxu0 %v47
    %53 = vmatpush.msra.mxu0 %v46
    %54 = vmatpush.msra.mxu0 %v45
    %55 = vmatpush.msra.mxu0 %v44
    %56 = vmatpush.msra.mxu0 %v43
    %57 = vmatpush.msra.mxu0 %v42
    %58 = vmatpush.msra.mxu0 %v41
    %59 = vmatpush.msra.mxu0 %v40
    %60 = vmatpush.msra.mxu0 %v39
    %61 = vmatpush.msra.mxu0 %v38
    %62 = vmatpush.msra.mxu0 %v37
    %63 = vmatpush.msra.mxu0 %v36
    %64 = vmatpush.msra.mxu0 %v35
    %65 = vmatpush.msra.mxu0 %v34
    %66 = vmatpush.msra.mxu0 %v33
    %67 = vmatpush.msra.mxu0 %v32
    %68 = vmatmul.f32.gmra.mxu0 %v31
    %v69 = vpop.f32.mrf.mxu0
    %v70 = vadd.f32 %v50, %v69
    %71 = vdwg.mxu0
    %v72 = vmax.f32 %v70, 0.0
    %73 = vst [vmem:[#allocation5] sm:$0xff] %v72
    // Predicated region
    $region18: #{_linear_block_forward.1} parent=1 // pred_check
      _
    $region19: #{_linear_block_forward.1} parent=1 // pred_check_branch
      %75 = sbr.rel (0) target = $region21
    $region20: #{_linear_block_forward.1} parent=1 // pred_region
      %77 = vsyncadd [#allocation4], 0
      %s79 = sshll.u32 [#allocation5], 4
      %s80 = int_to_ptr.vmem [resolvable:$true] %s79
      %s81 = sshll.u32 %s3, 4
      %s82 = int_to_ptr.hbm [resolvable:$true] %s81
      %84 = dma.vmem_to_hbm [thread:$0]  %s80, 128, %s82, [#allocation4]
    $region21: #{_linear_block_forward.1} parent=1 // pred_fallthru
      _
    // Predicated region
    $region22: #{_linear_block_forward.1} parent=1 // pred_check
      _
    $region23: #{_linear_block_forward.1} parent=1 // pred_check_branch
      %86 = sbr.rel (0) target = $region25
    $region24: #{_linear_block_forward.1} parent=1 // pred_region
      %88 = dma.done [#allocation4], 128
    $region25: #{_linear_block_forward.1} parent=1 // pred_fallthru
      _
    %89 = vsyncpa [#allocation3], 1
    %90 = vsyncpa [#allocation4], 1

</llo_original>
